<compile_context>
chip_gen: v5e
topology: v5e:2x2
jax: 0.10.0
libtpu: 0.0.40
codegen_flags: <defaults>
</compile_context>

<pallas_src>
import math
import numpy as np
import jax
import jax.numpy as jnp
from jax.experimental import pallas as pl
from jax.experimental.pallas import tpu as pltpu

# ---------------- config (small, consistent with the module) ----------------
BATCH      = 2
SEQ        = 8
INPUT_DIM  = 32
NUM_HEADS  = 4
HEAD_DIM   = 8
EMBED_DIM  = NUM_HEADS * HEAD_DIM          # 32 (== INPUT_DIM: allows qkv|wf packing)
OUTPUT_DIM = 32                            # must equal INPUT_DIM for the residual
EPS        = 1e-5
BS         = BATCH * SEQ                   # flattened (batch*seq) rows
MASK_NEG   = -1e30


# ----------------------------- Pallas kernel --------------------------------
def attention_layer_kernel(x_ref, w_ref, tab_ref, out_ref):
    """Single-step kernel over the whole problem.

    x_ref   : (BS, D)            flattened activations
    w_ref   : (D, 3E + OUT)      packed [wq | wk | wv | wf]  = (32, 128)
    tab_ref : (BS + 8, D)        rows 0:BS = positional encoding (batch-tiled);
                                 rows BS:BS+8 = bq, bk, bv, bf, g_fm, b_fm, g_out, b_out
    out_ref : (BS, OUT)
    """
    f32 = jnp.float32
    E, H, Hd = EMBED_DIM, NUM_HEADS, HEAD_DIM

    tab = tab_ref[...]
    pe  = tab[0:BS, :]                                       # (BS, D)
    vec = tab[BS:BS + 8, :]                                   # (8, OUT)
    w   = w_ref[...]                                          # (D, 128)

    x = x_ref[...] + pe                                       # positional encoding
    x_res = x

    # --- fused QKV projection: one full-depth MXU push, (BS,32) @ (32,96) ----
    qkv = jnp.dot(x, w[:, :3 * E], preferred_element_type=f32)     # (BS, 3E)
    q = (qkv[:, 0:E] + vec[0:1, :]) * (1.0 / math.sqrt(Hd))        # pre-scaled once
    k = qkv[:, E:2 * E] + vec[1:2, :]
    v = jnp.maximum(qkv[:, 2 * E:3 * E] + vec[2:3, :], 0.0)        # ReLU value map

    # --- block-diagonal additive mask (keeps the batches apart), built -------
    # --- in-kernel, div-free: batch id = number of sequence boundaries passed.
    row = jax.lax.broadcasted_iota(jnp.int32, (BS, BS), 0)
    col = jax.lax.broadcasted_iota(jnp.int32, (BS, BS), 1)
    rb = jnp.zeros((BS, BS), jnp.int32)
    cb = jnp.zeros((BS, BS), jnp.int32)
    for b in range(1, BATCH):
        rb = rb + jnp.where(row >= b * SEQ, 1, 0)
        cb = cb + jnp.where(col >= b * SEQ, 1, 0)
    neg = jnp.where(rb == cb, 0.0, MASK_NEG).astype(f32)           # (BS, BS)

    # --- per-head attention via lane-masked full-depth matmuls ---------------
    kT = jnp.transpose(k)                                          # (E, BS), hoisted once
    lane = jax.lax.broadcasted_iota(jnp.int32, (BS, E), 1)

    ctx = None                                                     # accumulates (BS, E)
    for h in range(H):                                             # static unroll (H=4)
        sel = (lane >= h * Hd) & (lane < (h + 1) * Hd)             # head-h lanes
        q_h = jnp.where(sel, q, 0.0)
        s = jnp.dot(q_h, kT, preferred_element_type=f32) + neg     # (BS, BS)
        s = s - jnp.max(s, axis=-1, keepdims=True)
        e = jnp.exp(s)
        p = e / jnp.sum(e, axis=-1, keepdims=True)                 # exact divide
        c = jnp.dot(p, jnp.where(sel, v, 0.0), preferred_element_type=f32)
        ctx = c if ctx is None else ctx + c                        # head-concatenated

    # --- feature map: single full-depth matmul + ReLU + LayerNorm ------------
    h1 = jnp.dot(ctx, w[:, 3 * E:3 * E + OUTPUT_DIM],
                 preferred_element_type=f32) + vec[3:4, :]
    h1 = jnp.maximum(h1, 0.0)
    mu = jnp.mean(h1, axis=-1, keepdims=True)
    var = jnp.mean((h1 - mu) ** 2, axis=-1, keepdims=True)
    y = (h1 - mu) / jnp.sqrt(var + EPS) * vec[4:5, :] + vec[5:6, :]

    # --- residual + output LayerNorm ------------------------------------------
    z = x_res + y
    mu2 = jnp.mean(z, axis=-1, keepdims=True)
    var2 = jnp.mean((z - mu2) ** 2, axis=-1, keepdims=True)
    # NOTE: output is ~0.5 vreg total; a lane-dense relayout would cost more
    # than the masked 32-lane store it removes.
    out_ref[...] = (z - mu2) / jnp.sqrt(var2 + EPS) * vec[6:7, :] + vec[7:8, :]


def attention_layer(x, w_packed, table):
    B, S, D = x.shape
    x2d = x.reshape(B * S, D)

    flops = (2 * BS * INPUT_DIM * 3 * EMBED_DIM                       # qkv
             + NUM_HEADS * (2 * BS * INPUT_DIM * BS                   # scores
                            + 2 * BS * BS * EMBED_DIM)                # ctx
             + 2 * BS * EMBED_DIM * OUTPUT_DIM)                       # feature map
    transcendentals = NUM_HEADS * BS * BS + 2 * BS                    # exp + sqrt
    bytes_accessed = 4 * (BS * INPUT_DIM                              # x
                          + (BS + 8) * INPUT_DIM                      # table
                          + INPUT_DIM * (3 * EMBED_DIM + OUTPUT_DIM)  # packed weights
                          + BS * OUTPUT_DIM)                          # output

    out2d = pl.pallas_call(
        attention_layer_kernel,
        out_shape=jax.ShapeDtypeStruct((B * S, OUTPUT_DIM), jnp.float32),
        # no grid: whole problem in one step; all operands whole-array in VMEM
        in_specs=[pl.BlockSpec(memory_space=pltpu.MemorySpace.VMEM)] * 3,
        out_specs=pl.BlockSpec(memory_space=pltpu.MemorySpace.VMEM),
        cost_estimate=pl.CostEstimate(flops=flops,
                                      transcendentals=transcendentals,
                                      bytes_accessed=bytes_accessed),
    )(x2d, w_packed, table)
    return out2d.reshape(B, S, OUTPUT_DIM)


# -------------------------- parameter construction --------------------------
def xavier_uniform(key, fan_in, fan_out):
    a = math.sqrt(6.0 / (fan_in + fan_out))
    return jax.random.uniform(key, (fan_in, fan_out), jnp.float32, -a, a)


def linear_bias(key, fan_in, fan_out):
    a = 1.0 / math.sqrt(fan_in)
    return jax.random.uniform(key, (1, fan_out), jnp.float32, -a, a)


def make_params(key):
    ks = jax.random.split(key, 8)
    return dict(
        wq=xavier_uniform(ks[0], INPUT_DIM, EMBED_DIM),
        bq=linear_bias(ks[1], INPUT_DIM, EMBED_DIM),
        wk=xavier_uniform(ks[2], INPUT_DIM, EMBED_DIM),
        bk=linear_bias(ks[3], INPUT_DIM, EMBED_DIM),
        wv=xavier_uniform(ks[4], INPUT_DIM, EMBED_DIM),
        bv=linear_bias(ks[5], INPUT_DIM, EMBED_DIM),
        wf=xavier_uniform(ks[6], EMBED_DIM, OUTPUT_DIM),
        bf=linear_bias(ks[7], EMBED_DIM, OUTPUT_DIM),
        g_fm=jnp.ones((1, OUTPUT_DIM), jnp.float32),
        b_fm=jnp.zeros((1, OUTPUT_DIM), jnp.float32),
        g_out=jnp.ones((1, OUTPUT_DIM), jnp.float32),
        b_out=jnp.zeros((1, OUTPUT_DIM), jnp.float32),
    )


def pack_params(p):
    assert EMBED_DIM == INPUT_DIM, "qkv|wf lane-packing relies on EMBED_DIM == INPUT_DIM"
    # [wq | wk | wv | wf] along lanes -> (D, 3E+OUT) = (32, 128)
    w_packed = jnp.concatenate([p["wq"], p["wk"], p["wv"], p["wf"]], axis=1)
    # 8 small (1, 32) vectors packed into one (8, 32) array
    vec_packed = jnp.concatenate(
        [p["bq"], p["bk"], p["bv"], p["bf"],
         p["g_fm"], p["b_fm"], p["g_out"], p["b_out"]], axis=0)
    return w_packed, vec_packed


def sinusoidal_pe(seq_len, d_model):
    pos = np.arange(seq_len)[:, None].astype(np.float32)
    i = np.arange(0, d_model, 2).astype(np.float32)
    div = np.exp(-math.log(10000.0) * i / d_model)
    pe = np.zeros((seq_len, d_model), np.float32)
    pe[:, 0::2] = np.sin(pos * div)
    pe[:, 1::2] = np.cos(pos * div)
    return pe


# ----------------------------- pure-JAX reference ----------------------------
def reference(x, pe, p):
    x = x + pe
    res = x
    q = x @ p["wq"] + p["bq"]
    k = x @ p["wk"] + p["bk"]
    v = jnp.maximum(x @ p["wv"] + p["bv"], 0.0)
    B, S, _ = x.shape
    rs = lambda t: t.reshape(B, S, NUM_HEADS, HEAD_DIM).transpose(0, 2, 1, 3)
    qh, kh, vh = rs(q), rs(k), rs(v)
    scores = jnp.einsum("bhqd,bhkd->bhqk", qh, kh) / math.sqrt(HEAD_DIM)
    attn = jax.nn.softmax(scores, axis=-1)
    ctx = jnp.einsum("bhqk,bhkd->bhqd", attn, vh).transpose(0, 2, 1, 3).reshape(B, S, EMBED_DIM)
    h1 = jnp.maximum(ctx @ p["wf"] + p["bf"], 0.0)
    mu = h1.mean(-1, keepdims=True)
    var = ((h1 - mu) ** 2).mean(-1, keepdims=True)
    y = (h1 - mu) / jnp.sqrt(var + EPS) * p["g_fm"] + p["b_fm"]
    z = res + y
    mu2 = z.mean(-1, keepdims=True)
    var2 = ((z - mu2) ** 2).mean(-1, keepdims=True)
    return (z - mu2) / jnp.sqrt(var2 + EPS) * p["g_out"] + p["b_out"]


# ----------------------------------- main ------------------------------------
if __name__ == "__main__":
    key = jax.random.PRNGKey(0)
    k_x, k_p = jax.random.split(key)
    x = jax.random.normal(k_x, (BATCH, SEQ, INPUT_DIM), jnp.float32)
    params = make_params(k_p)

    pe = sinusoidal_pe(SEQ, INPUT_DIM)                        # np (S, D)
    pe2d = jnp.asarray(np.tile(pe, (BATCH, 1)))               # (B*S, D)
    w_packed, vec_packed = pack_params(params)
    table = jnp.concatenate([pe2d, vec_packed], axis=0)       # (B*S + 8, D)

    out = attention_layer(x, w_packed, table)
    out = jax.block_until_ready(out)

    ref = reference(x, jnp.asarray(pe), params)
    assert out.shape == (BATCH, SEQ, OUTPUT_DIM)
    max_err = float(jnp.max(jnp.abs(out - ref)))
    # Exact divides / sqrt in the kernel: agreement is typically ~1e-6;
    # 2e-4 leaves margin for matmul accumulation-order differences.
    assert jnp.allclose(out, ref, atol=2e-4, rtol=2e-4), \
        f"mismatch vs pure-JAX reference (max abs err={max_err})"
    print("KERNEL_OK")
</pallas_src>

<mosaic_0001>
module attributes {stable_mosaic.version = 11 : i64} {
  func.func @attention_layer_kernel(%arg0: memref<16x32xf32, #tpu.memory_space<vmem>>, %arg1: memref<32x128xf32, #tpu.memory_space<vmem>>, %arg2: memref<24x32xf32, #tpu.memory_space<vmem>>, %arg3: memref<16x32xf32, #tpu.memory_space<vmem>>) attributes {dimension_semantics = [], scalar_prefetch = 0 : i64, scratch_operands = 0 : i64, tpu.core_type = #tpu.core_type<tc>} {
    %c0 = arith.constant 0 : index
    %c0_0 = arith.constant 0 : index
    %0 = vector.load %arg2[%c0, %c0_0] : memref<24x32xf32, #tpu.memory_space<vmem>>, vector<24x32xf32>
    %1 = vector.extract_strided_slice %0 {offsets = [0, 0], sizes = [16, 32], strides = [1, 1]} : vector<24x32xf32> to vector<16x32xf32>
    %2 = vector.extract_strided_slice %0 {offsets = [16, 0], sizes = [8, 32], strides = [1, 1]} : vector<24x32xf32> to vector<8x32xf32>
    %c0_1 = arith.constant 0 : index
    %c0_2 = arith.constant 0 : index
    %3 = vector.load %arg1[%c0_1, %c0_2] : memref<32x128xf32, #tpu.memory_space<vmem>>, vector<32x128xf32>
    %c0_3 = arith.constant 0 : index
    %c0_4 = arith.constant 0 : index
    %4 = vector.load %arg0[%c0_3, %c0_4] : memref<16x32xf32, #tpu.memory_space<vmem>>, vector<16x32xf32>
    %5 = arith.addf %4, %1 : vector<16x32xf32>
    %6 = vector.extract_strided_slice %3 {offsets = [0, 0], sizes = [32, 96], strides = [1, 1]} : vector<32x128xf32> to vector<32x96xf32>
    %cst = arith.constant dense<0.000000e+00> : vector<16x96xf32>
    %7 = tpu.matmul %5, %6, %cst {dimension_numbers = #tpu.dot_dimension_numbers<[1], [0], [0], [1], [0, 0, 1, 1], [], []>} : vector<16x32xf32>, vector<32x96xf32>, vector<16x96xf32> -> vector<16x96xf32>
    %8 = vector.extract_strided_slice %7 {offsets = [0, 0], sizes = [16, 32], strides = [1, 1]} : vector<16x96xf32> to vector<16x32xf32>
    %9 = vector.extract_strided_slice %2 {offsets = [0, 0], sizes = [1, 32], strides = [1, 1]} : vector<8x32xf32> to vector<1x32xf32>
    %10 = vector.broadcast %9 : vector<1x32xf32> to vector<16x32xf32>
    %11 = arith.addf %8, %10 : vector<16x32xf32>
    %cst_5 = arith.constant 0.353553385 : f32
    %12 = vector.broadcast %cst_5 : f32 to vector<16x32xf32>
    %13 = arith.mulf %11, %12 : vector<16x32xf32>
    %14 = vector.extract_strided_slice %7 {offsets = [0, 32], sizes = [16, 32], strides = [1, 1]} : vector<16x96xf32> to vector<16x32xf32>
    %15 = vector.extract_strided_slice %2 {offsets = [1, 0], sizes = [1, 32], strides = [1, 1]} : vector<8x32xf32> to vector<1x32xf32>
    %16 = vector.broadcast %15 : vector<1x32xf32> to vector<16x32xf32>
    %17 = arith.addf %14, %16 : vector<16x32xf32>
    %18 = vector.extract_strided_slice %7 {offsets = [0, 64], sizes = [16, 32], strides = [1, 1]} : vector<16x96xf32> to vector<16x32xf32>
    %19 = vector.extract_strided_slice %2 {offsets = [2, 0], sizes = [1, 32], strides = [1, 1]} : vector<8x32xf32> to vector<1x32xf32>
    %20 = vector.broadcast %19 : vector<1x32xf32> to vector<16x32xf32>
    %21 = arith.addf %18, %20 : vector<16x32xf32>
    %cst_6 = arith.constant 0.000000e+00 : f32
    %22 = vector.broadcast %cst_6 : f32 to vector<16x32xf32>
    %23 = arith.maximumf %21, %22 : vector<16x32xf32>
    %24 = tpu.iota {dimensions = array<i32: 0>} : vector<16x16xi32>
    %25 = tpu.iota {dimensions = array<i32: 1>} : vector<16x16xi32>
    %c0_i32 = arith.constant 0 : i32
    %26 = vector.broadcast %c0_i32 : i32 to vector<16x16xi32>
    %c0_i32_7 = arith.constant 0 : i32
    %27 = vector.broadcast %c0_i32_7 : i32 to vector<16x16xi32>
    %c8_i32 = arith.constant 8 : i32
    %28 = vector.broadcast %c8_i32 : i32 to vector<16x16xi32>
    %29 = arith.cmpi sge, %24, %28 : vector<16x16xi32>
    %c1_i32 = arith.constant 1 : i32
    %c0_i32_8 = arith.constant 0 : i32
    %30 = vector.broadcast %c1_i32 : i32 to vector<16x16xi32>
    %31 = vector.broadcast %c0_i32_8 : i32 to vector<16x16xi32>
    %32 = arith.select %29, %30, %31 : vector<16x16xi1>, vector<16x16xi32>
    %33 = arith.addi %26, %32 : vector<16x16xi32>
    %c8_i32_9 = arith.constant 8 : i32
    %34 = vector.broadcast %c8_i32_9 : i32 to vector<16x16xi32>
    %35 = arith.cmpi sge, %25, %34 : vector<16x16xi32>
    %c1_i32_10 = arith.constant 1 : i32
    %c0_i32_11 = arith.constant 0 : i32
    %36 = vector.broadcast %c1_i32_10 : i32 to vector<16x16xi32>
    %37 = vector.broadcast %c0_i32_11 : i32 to vector<16x16xi32>
    %38 = arith.select %35, %36, %37 : vector<16x16xi1>, vector<16x16xi32>
    %39 = arith.addi %27, %38 : vector<16x16xi32>
    %40 = arith.cmpi eq, %33, %39 : vector<16x16xi32>
    %cst_12 = arith.constant 0.000000e+00 : f32
    %cst_13 = arith.constant -1.000000e+30 : f32
    %41 = vector.broadcast %cst_12 : f32 to vector<16x16xf32>
    %42 = vector.broadcast %cst_13 : f32 to vector<16x16xf32>
    %43 = arith.select %40, %41, %42 : vector<16x16xi1>, vector<16x16xf32>
    %44 = tpu.transpose %17, [1, 0] : vector<16x32xf32> -> vector<32x16xf32>
    %45 = tpu.iota {dimensions = array<i32: 1>} : vector<16x32xi32>
    %c0_i32_14 = arith.constant 0 : i32
    %46 = vector.broadcast %c0_i32_14 : i32 to vector<16x32xi32>
    %47 = arith.cmpi sge, %45, %46 : vector<16x32xi32>
    %c8_i32_15 = arith.constant 8 : i32
    %48 = vector.broadcast %c8_i32_15 : i32 to vector<16x32xi32>
    %49 = arith.cmpi slt, %45, %48 : vector<16x32xi32>
    %50 = arith.andi %47, %49 : vector<16x32xi1>
    %cst_16 = arith.constant 0.000000e+00 : f32
    %51 = vector.broadcast %cst_16 : f32 to vector<16x32xf32>
    %52 = arith.select %50, %13, %51 : vector<16x32xi1>, vector<16x32xf32>
    %cst_17 = arith.constant dense<0.000000e+00> : vector<16x16xf32>
    %53 = tpu.matmul %52, %44, %cst_17 {dimension_numbers = #tpu.dot_dimension_numbers<[1], [0], [0], [1], [0, 0, 1, 1], [], []>} : vector<16x32xf32>, vector<32x16xf32>, vector<16x16xf32> -> vector<16x16xf32>
    %54 = arith.addf %53, %43 : vector<16x16xf32>
    %cst_18 = arith.constant dense<0xFF800000> : vector<16xf32>
    %55 = vector.multi_reduction <maximumf>, %54, %cst_18 [1] : vector<16x16xf32> to vector<16xf32>
    %56 = vector.shape_cast %55 : vector<16xf32> to vector<16x1xf32>
    %57 = vector.broadcast %56 : vector<16x1xf32> to vector<16x16xf32>
    %58 = arith.subf %54, %57 : vector<16x16xf32>
    %59 = math.exp %58 : vector<16x16xf32>
    %cst_19 = arith.constant dense<0.000000e+00> : vector<16xf32>
    %60 = vector.multi_reduction <add>, %59, %cst_19 [1] : vector<16x16xf32> to vector<16xf32>
    %61 = vector.shape_cast %60 : vector<16xf32> to vector<16x1xf32>
    %62 = vector.broadcast %61 : vector<16x1xf32> to vector<16x16xf32>
    %63 = arith.divf %59, %62 : vector<16x16xf32>
    %cst_20 = arith.constant 0.000000e+00 : f32
    %64 = vector.broadcast %cst_20 : f32 to vector<16x32xf32>
    %65 = arith.select %50, %23, %64 : vector<16x32xi1>, vector<16x32xf32>
    %cst_21 = arith.constant dense<0.000000e+00> : vector<16x32xf32>
    %66 = tpu.matmul %63, %65, %cst_21 {dimension_numbers = #tpu.dot_dimension_numbers<[1], [0], [0], [1], [0, 0, 1, 1], [], []>} : vector<16x16xf32>, vector<16x32xf32>, vector<16x32xf32> -> vector<16x32xf32>
    %c8_i32_22 = arith.constant 8 : i32
    %67 = vector.broadcast %c8_i32_22 : i32 to vector<16x32xi32>
    %68 = arith.cmpi sge, %45, %67 : vector<16x32xi32>
    %c16_i32 = arith.constant 16 : i32
    %69 = vector.broadcast %c16_i32 : i32 to vector<16x32xi32>
    %70 = arith.cmpi slt, %45, %69 : vector<16x32xi32>
    %71 = arith.andi %68, %70 : vector<16x32xi1>
    %cst_23 = arith.constant 0.000000e+00 : f32
    %72 = vector.broadcast %cst_23 : f32 to vector<16x32xf32>
    %73 = arith.select %71, %13, %72 : vector<16x32xi1>, vector<16x32xf32>
    %cst_24 = arith.constant dense<0.000000e+00> : vector<16x16xf32>
    %74 = tpu.matmul %73, %44, %cst_24 {dimension_numbers = #tpu.dot_dimension_numbers<[1], [0], [0], [1], [0, 0, 1, 1], [], []>} : vector<16x32xf32>, vector<32x16xf32>, vector<16x16xf32> -> vector<16x16xf32>
    %75 = arith.addf %74, %43 : vector<16x16xf32>
    %cst_25 = arith.constant dense<0xFF800000> : vector<16xf32>
    %76 = vector.multi_reduction <maximumf>, %75, %cst_25 [1] : vector<16x16xf32> to vector<16xf32>
    %77 = vector.shape_cast %76 : vector<16xf32> to vector<16x1xf32>
    %78 = vector.broadcast %77 : vector<16x1xf32> to vector<16x16xf32>
    %79 = arith.subf %75, %78 : vector<16x16xf32>
    %80 = math.exp %79 : vector<16x16xf32>
    %cst_26 = arith.constant dense<0.000000e+00> : vector<16xf32>
    %81 = vector.multi_reduction <add>, %80, %cst_26 [1] : vector<16x16xf32> to vector<16xf32>
    %82 = vector.shape_cast %81 : vector<16xf32> to vector<16x1xf32>
    %83 = vector.broadcast %82 : vector<16x1xf32> to vector<16x16xf32>
    %84 = arith.divf %80, %83 : vector<16x16xf32>
    %cst_27 = arith.constant 0.000000e+00 : f32
    %85 = vector.broadcast %cst_27 : f32 to vector<16x32xf32>
    %86 = arith.select %71, %23, %85 : vector<16x32xi1>, vector<16x32xf32>
    %cst_28 = arith.constant dense<0.000000e+00> : vector<16x32xf32>
    %87 = tpu.matmul %84, %86, %cst_28 {dimension_numbers = #tpu.dot_dimension_numbers<[1], [0], [0], [1], [0, 0, 1, 1], [], []>} : vector<16x16xf32>, vector<16x32xf32>, vector<16x32xf32> -> vector<16x32xf32>
    %88 = arith.addf %66, %87 : vector<16x32xf32>
    %c16_i32_29 = arith.constant 16 : i32
    %89 = vector.broadcast %c16_i32_29 : i32 to vector<16x32xi32>
    %90 = arith.cmpi sge, %45, %89 : vector<16x32xi32>
    %c24_i32 = arith.constant 24 : i32
    %91 = vector.broadcast %c24_i32 : i32 to vector<16x32xi32>
    %92 = arith.cmpi slt, %45, %91 : vector<16x32xi32>
    %93 = arith.andi %90, %92 : vector<16x32xi1>
    %cst_30 = arith.constant 0.000000e+00 : f32
    %94 = vector.broadcast %cst_30 : f32 to vector<16x32xf32>
    %95 = arith.select %93, %13, %94 : vector<16x32xi1>, vector<16x32xf32>
    %cst_31 = arith.constant dense<0.000000e+00> : vector<16x16xf32>
    %96 = tpu.matmul %95, %44, %cst_31 {dimension_numbers = #tpu.dot_dimension_numbers<[1], [0], [0], [1], [0, 0, 1, 1], [], []>} : vector<16x32xf32>, vector<32x16xf32>, vector<16x16xf32> -> vector<16x16xf32>
    %97 = arith.addf %96, %43 : vector<16x16xf32>
    %cst_32 = arith.constant dense<0xFF800000> : vector<16xf32>
    %98 = vector.multi_reduction <maximumf>, %97, %cst_32 [1] : vector<16x16xf32> to vector<16xf32>
    %99 = vector.shape_cast %98 : vector<16xf32> to vector<16x1xf32>
    %100 = vector.broadcast %99 : vector<16x1xf32> to vector<16x16xf32>
    %101 = arith.subf %97, %100 : vector<16x16xf32>
    %102 = math.exp %101 : vector<16x16xf32>
    %cst_33 = arith.constant dense<0.000000e+00> : vector<16xf32>
    %103 = vector.multi_reduction <add>, %102, %cst_33 [1] : vector<16x16xf32> to vector<16xf32>
    %104 = vector.shape_cast %103 : vector<16xf32> to vector<16x1xf32>
    %105 = vector.broadcast %104 : vector<16x1xf32> to vector<16x16xf32>
    %106 = arith.divf %102, %105 : vector<16x16xf32>
    %cst_34 = arith.constant 0.000000e+00 : f32
    %107 = vector.broadcast %cst_34 : f32 to vector<16x32xf32>
    %108 = arith.select %93, %23, %107 : vector<16x32xi1>, vector<16x32xf32>
    %cst_35 = arith.constant dense<0.000000e+00> : vector<16x32xf32>
    %109 = tpu.matmul %106, %108, %cst_35 {dimension_numbers = #tpu.dot_dimension_numbers<[1], [0], [0], [1], [0, 0, 1, 1], [], []>} : vector<16x16xf32>, vector<16x32xf32>, vector<16x32xf32> -> vector<16x32xf32>
    %110 = arith.addf %88, %109 : vector<16x32xf32>
    %c24_i32_36 = arith.constant 24 : i32
    %111 = vector.broadcast %c24_i32_36 : i32 to vector<16x32xi32>
    %112 = arith.cmpi sge, %45, %111 : vector<16x32xi32>
    %c32_i32 = arith.constant 32 : i32
    %113 = vector.broadcast %c32_i32 : i32 to vector<16x32xi32>
    %114 = arith.cmpi slt, %45, %113 : vector<16x32xi32>
    %115 = arith.andi %112, %114 : vector<16x32xi1>
    %cst_37 = arith.constant 0.000000e+00 : f32
    %116 = vector.broadcast %cst_37 : f32 to vector<16x32xf32>
    %117 = arith.select %115, %13, %116 : vector<16x32xi1>, vector<16x32xf32>
    %cst_38 = arith.constant dense<0.000000e+00> : vector<16x16xf32>
    %118 = tpu.matmul %117, %44, %cst_38 {dimension_numbers = #tpu.dot_dimension_numbers<[1], [0], [0], [1], [0, 0, 1, 1], [], []>} : vector<16x32xf32>, vector<32x16xf32>, vector<16x16xf32> -> vector<16x16xf32>
    %119 = arith.addf %118, %43 : vector<16x16xf32>
    %cst_39 = arith.constant dense<0xFF800000> : vector<16xf32>
    %120 = vector.multi_reduction <maximumf>, %119, %cst_39 [1] : vector<16x16xf32> to vector<16xf32>
    %121 = vector.shape_cast %120 : vector<16xf32> to vector<16x1xf32>
    %122 = vector.broadcast %121 : vector<16x1xf32> to vector<16x16xf32>
    %123 = arith.subf %119, %122 : vector<16x16xf32>
    %124 = math.exp %123 : vector<16x16xf32>
    %cst_40 = arith.constant dense<0.000000e+00> : vector<16xf32>
    %125 = vector.multi_reduction <add>, %124, %cst_40 [1] : vector<16x16xf32> to vector<16xf32>
    %126 = vector.shape_cast %125 : vector<16xf32> to vector<16x1xf32>
    %127 = vector.broadcast %126 : vector<16x1xf32> to vector<16x16xf32>
    %128 = arith.divf %124, %127 : vector<16x16xf32>
    %cst_41 = arith.constant 0.000000e+00 : f32
    %129 = vector.broadcast %cst_41 : f32 to vector<16x32xf32>
    %130 = arith.select %115, %23, %129 : vector<16x32xi1>, vector<16x32xf32>
    %cst_42 = arith.constant dense<0.000000e+00> : vector<16x32xf32>
    %131 = tpu.matmul %128, %130, %cst_42 {dimension_numbers = #tpu.dot_dimension_numbers<[1], [0], [0], [1], [0, 0, 1, 1], [], []>} : vector<16x16xf32>, vector<16x32xf32>, vector<16x32xf32> -> vector<16x32xf32>
    %132 = arith.addf %110, %131 : vector<16x32xf32>
    %133 = vector.extract_strided_slice %3 {offsets = [0, 96], sizes = [32, 32], strides = [1, 1]} : vector<32x128xf32> to vector<32x32xf32>
    %cst_43 = arith.constant dense<0.000000e+00> : vector<16x32xf32>
    %134 = tpu.matmul %132, %133, %cst_43 {dimension_numbers = #tpu.dot_dimension_numbers<[1], [0], [0], [1], [0, 0, 1, 1], [], []>} : vector<16x32xf32>, vector<32x32xf32>, vector<16x32xf32> -> vector<16x32xf32>
    %135 = vector.extract_strided_slice %2 {offsets = [3, 0], sizes = [1, 32], strides = [1, 1]} : vector<8x32xf32> to vector<1x32xf32>
    %136 = vector.broadcast %135 : vector<1x32xf32> to vector<16x32xf32>
    %137 = arith.addf %134, %136 : vector<16x32xf32>
    %cst_44 = arith.constant 0.000000e+00 : f32
    %138 = vector.broadcast %cst_44 : f32 to vector<16x32xf32>
    %139 = arith.maximumf %137, %138 : vector<16x32xf32>
    %cst_45 = arith.constant dense<0.000000e+00> : vector<16xf32>
    %140 = vector.multi_reduction <add>, %139, %cst_45 [1] : vector<16x32xf32> to vector<16xf32>
    %141 = vector.shape_cast %140 : vector<16xf32> to vector<16x1xf32>
    %cst_46 = arith.constant 3.200000e+01 : f32
    %142 = vector.broadcast %cst_46 : f32 to vector<16x1xf32>
    %143 = arith.divf %141, %142 : vector<16x1xf32>
    %144 = vector.broadcast %143 : vector<16x1xf32> to vector<16x32xf32>
    %145 = arith.subf %139, %144 : vector<16x32xf32>
    %146 = arith.mulf %145, %145 : vector<16x32xf32>
    %cst_47 = arith.constant dense<0.000000e+00> : vector<16xf32>
    %147 = vector.multi_reduction <add>, %146, %cst_47 [1] : vector<16x32xf32> to vector<16xf32>
    %148 = vector.shape_cast %147 : vector<16xf32> to vector<16x1xf32>
    %cst_48 = arith.constant 3.200000e+01 : f32
    %149 = vector.broadcast %cst_48 : f32 to vector<16x1xf32>
    %150 = arith.divf %148, %149 : vector<16x1xf32>
    %151 = vector.broadcast %143 : vector<16x1xf32> to vector<16x32xf32>
    %152 = arith.subf %139, %151 : vector<16x32xf32>
    %cst_49 = arith.constant 9.99999974E-6 : f32
    %153 = vector.broadcast %cst_49 : f32 to vector<16x1xf32>
    %154 = arith.addf %150, %153 : vector<16x1xf32>
    %155 = math.sqrt %154 : vector<16x1xf32>
    %156 = vector.broadcast %155 : vector<16x1xf32> to vector<16x32xf32>
    %157 = arith.divf %152, %156 : vector<16x32xf32>
    %158 = vector.extract_strided_slice %2 {offsets = [4, 0], sizes = [1, 32], strides = [1, 1]} : vector<8x32xf32> to vector<1x32xf32>
    %159 = vector.broadcast %158 : vector<1x32xf32> to vector<16x32xf32>
    %160 = arith.mulf %157, %159 : vector<16x32xf32>
    %161 = vector.extract_strided_slice %2 {offsets = [5, 0], sizes = [1, 32], strides = [1, 1]} : vector<8x32xf32> to vector<1x32xf32>
    %162 = vector.broadcast %161 : vector<1x32xf32> to vector<16x32xf32>
    %163 = arith.addf %160, %162 : vector<16x32xf32>
    %164 = arith.addf %5, %163 : vector<16x32xf32>
    %cst_50 = arith.constant dense<0.000000e+00> : vector<16xf32>
    %165 = vector.multi_reduction <add>, %164, %cst_50 [1] : vector<16x32xf32> to vector<16xf32>
    %166 = vector.shape_cast %165 : vector<16xf32> to vector<16x1xf32>
    %cst_51 = arith.constant 3.200000e+01 : f32
    %167 = vector.broadcast %cst_51 : f32 to vector<16x1xf32>
    %168 = arith.divf %166, %167 : vector<16x1xf32>
    %169 = vector.broadcast %168 : vector<16x1xf32> to vector<16x32xf32>
    %170 = arith.subf %164, %169 : vector<16x32xf32>
    %171 = arith.mulf %170, %170 : vector<16x32xf32>
    %cst_52 = arith.constant dense<0.000000e+00> : vector<16xf32>
    %172 = vector.multi_reduction <add>, %171, %cst_52 [1] : vector<16x32xf32> to vector<16xf32>
    %173 = vector.shape_cast %172 : vector<16xf32> to vector<16x1xf32>
    %cst_53 = arith.constant 3.200000e+01 : f32
    %174 = vector.broadcast %cst_53 : f32 to vector<16x1xf32>
    %175 = arith.divf %173, %174 : vector<16x1xf32>
    %176 = vector.broadcast %168 : vector<16x1xf32> to vector<16x32xf32>
    %177 = arith.subf %164, %176 : vector<16x32xf32>
    %cst_54 = arith.constant 9.99999974E-6 : f32
    %178 = vector.broadcast %cst_54 : f32 to vector<16x1xf32>
    %179 = arith.addf %175, %178 : vector<16x1xf32>
    %180 = math.sqrt %179 : vector<16x1xf32>
    %181 = vector.broadcast %180 : vector<16x1xf32> to vector<16x32xf32>
    %182 = arith.divf %177, %181 : vector<16x32xf32>
    %183 = vector.extract_strided_slice %2 {offsets = [6, 0], sizes = [1, 32], strides = [1, 1]} : vector<8x32xf32> to vector<1x32xf32>
    %184 = vector.broadcast %183 : vector<1x32xf32> to vector<16x32xf32>
    %185 = arith.mulf %182, %184 : vector<16x32xf32>
    %186 = vector.extract_strided_slice %2 {offsets = [7, 0], sizes = [1, 32], strides = [1, 1]} : vector<8x32xf32> to vector<1x32xf32>
    %187 = vector.broadcast %186 : vector<1x32xf32> to vector<16x32xf32>
    %188 = arith.addf %185, %187 : vector<16x32xf32>
    %c0_55 = arith.constant 0 : index
    %c0_56 = arith.constant 0 : index
    %189 = vector.load %arg3[%c0_55, %c0_56] : memref<16x32xf32, #tpu.memory_space<vmem>>, vector<16x32xf32>
    tpu.vector_store %arg3[%c0_55, %c0_56], %188 {strides = array<i32>} : memref<16x32xf32, #tpu.memory_space<vmem>>, vector<16x32xf32>,
    return
  }
}

</mosaic_0001>

<llo_original>
// kernel: tpu_custom_call.1
$region0: #{tpu_custom_call.1}
  #allocation0 [shape = 'u32[]', space=smem, size = 0x4, offset = 0x4, fixed_abs, tag = 'smem constant byte address 0x4 - core index']
  #allocation1 [shape = 'u32[72,128]{1,0:T(1,128)}', space=vmem, size = 0x9000, scoped, tag = 'internal scratch']
  %s0 = inlined_call_operand.hbm [shape: f32[16,32], index: 0, kind: input, shape index: {}]
  %s1 = inlined_call_operand.hbm [shape: f32[32,128], index: 1, kind: input, shape index: {}]
  %s2 = inlined_call_operand.hbm [shape: f32[24,32], index: 2, kind: input, shape index: {}]
  %s3 = inlined_call_operand.hbm [shape: f32[16,32], index: 3, kind: output, shape index: {}]
  %s4 = sld [smem:[#allocation0]]
  $region34: #{tpu_custom_call.1} parent=0
    _
  %s6 = ssub.s32 1, %s4
  %s7 = scalar_select 0, %s6, %s4
  $region1: #{tpu_custom_call.1} parent=0
    #allocation2 [shape = 'u8[8192]{0}', space=vmem, size = 0x2000, scoped, tag = 'input window, operand 0, single buffered']
    #allocation3 [shape = 's32[1]{0}', space=sflag, size = 0x4, scoped, tag = 'scoped memory for tpu_custom_call.1']
    #allocation4 [shape = 's32[1]{0}', space=sflag, size = 0x4, scoped, tag = 'scoped memory for tpu_custom_call.1']
    #allocation5 [shape = 'u8[16384]{0}', space=vmem, size = 0x4000, scoped, tag = 'input window, operand 1, single buffered']
    #allocation6 [shape = 's32[1]{0}', space=sflag, size = 0x4, scoped, tag = 'scoped memory for tpu_custom_call.1']
    #allocation7 [shape = 'u8[12288]{0}', space=vmem, size = 0x3000, scoped, tag = 'input window, operand 2, single buffered']
    #allocation8 [shape = 'u8[8192]{0}', space=vmem, size = 0x2000, scoped, tag = 'output window, operand 0, single buffered']
    %8 = vsyncpa [#allocation3], 0
    %9 = vsyncpa [#allocation6], 0
    %10 = vsyncpa [#allocation4], 0
    // Predicated region
    $region2: #{tpu_custom_call.1} parent=1 // pred_check
      _
    $region3: #{tpu_custom_call.1} parent=1 // pred_check_branch
      %12 = sbr.rel (0) target = $region5
    $region4: #{tpu_custom_call.1} parent=1 // pred_region
      %14 = vsyncadd [#allocation3], 0
      %s15 = sshll.u32 %s0, 4
      %s16 = int_to_ptr.hbm [resolvable:$true] %s15
      %s17 = sshll.u32 [#allocation2], 4
      %s18 = int_to_ptr.vmem [resolvable:$true] %s17
      %23 = dma.hbm_to_vmem [thread:$0]  %s16, 256, %s18, [#allocation3], 128, 128, 8
    $region5: #{tpu_custom_call.1} parent=1 // pred_fallthru
      _
    // Predicated region
    $region6: #{tpu_custom_call.1} parent=1 // pred_check
      _
    $region7: #{tpu_custom_call.1} parent=1 // pred_check_branch
      %25 = sbr.rel (0) target = $region9
    $region8: #{tpu_custom_call.1} parent=1 // pred_region
      %27 = vsyncadd [#allocation6], 0
      %s28 = sshll.u32 %s1, 4
      %s29 = int_to_ptr.hbm [resolvable:$true] %s28
      %s30 = sshll.u32 [#allocation5], 4
      %s31 = int_to_ptr.vmem [resolvable:$true] %s30
      %36 = dma.hbm_to_vmem [thread:$0]  %s29, 512, %s31, [#allocation6], 128, 128, 8
    $region9: #{tpu_custom_call.1} parent=1 // pred_fallthru
      _
    // Predicated region
    $region10: #{tpu_custom_call.1} parent=1 // pred_check
      _
    $region11: #{tpu_custom_call.1} parent=1 // pred_check_branch
      %38 = sbr.rel (0) target = $region13
    $region12: #{tpu_custom_call.1} parent=1 // pred_region
      %40 = vsyncadd [#allocation6], 0
      %s41 = sshll.u32 %s2, 4
      %s42 = int_to_ptr.hbm [resolvable:$true] %s41
      %s43 = sshll.u32 [#allocation7], 4
      %s44 = int_to_ptr.vmem [resolvable:$true] %s43
      %49 = dma.hbm_to_vmem [thread:$0]  %s42, 384, %s44, [#allocation6], 128, 128, 8
    $region13: #{tpu_custom_call.1} parent=1 // pred_fallthru
      _
    // Predicated region
    $region14: #{tpu_custom_call.1} parent=1 // pred_check
      _
    $region15: #{tpu_custom_call.1} parent=1 // pred_check_branch
      %51 = sbr.rel (0) target = $region17
    $region16: #{tpu_custom_call.1} parent=1 // pred_region
      %53 = dma.done [#allocation3], 256
    $region17: #{tpu_custom_call.1} parent=1 // pred_fallthru
      _
    // Predicated region
    $region18: #{tpu_custom_call.1} parent=1 // pred_check
      _
    $region19: #{tpu_custom_call.1} parent=1 // pred_check_branch
      %55 = sbr.rel (0) target = $region21
    $region20: #{tpu_custom_call.1} parent=1 // pred_region
      %57 = dma.done [#allocation6], 512
    $region21: #{tpu_custom_call.1} parent=1 // pred_fallthru
      _
    // Predicated region
    $region22: #{tpu_custom_call.1} parent=1 // pred_check
      _
    $region23: #{tpu_custom_call.1} parent=1 // pred_check_branch
      %59 = sbr.rel (0) target = $region25
    $region24: #{tpu_custom_call.1} parent=1 // pred_region
      %61 = dma.done [#allocation6], 384
    $region25: #{tpu_custom_call.1} parent=1 // pred_fallthru
      _
    %v62 = vld [vmem:[#allocation7] sm:$0xff]
    %v63 = vld [vmem:[#allocation7 + $0x8] sm:$0xff]
    %v64 = vld [vmem:[#allocation7 + $0x10] sm:$0xff]
    %v65 = vld [vmem:[#allocation5] sm:$0xff]
    %v66 = vld [vmem:[#allocation5 + $0x8] sm:$0xff]
    %v67 = vld [vmem:[#allocation5 + $0x10] sm:$0xff]
    %v68 = vld [vmem:[#allocation5 + $0x18] sm:$0xff]
    %v69 = vld [vmem:[#allocation2] sm:$0xff]
    %v70 = vld [vmem:[#allocation2 + $0x8] sm:$0xff]
    %v71 = vadd.f32 %v69, %v62
    %v72 = vadd.f32 %v70, %v63
    %vm73 = vcmask 261120
    %v75 = vsel %vm73, %v71, 0
    %v78 = vsel %vm73, %v72, 0
    %80 = vmatpush.msra.mxu0 0.0
    %81 = vmatpush.msra.mxu0 0.0
    %82 = vmatpush.msra.mxu0 0.0
    %83 = vmatpush.msra.mxu0 0.0
    %84 = vmatpush.msra.mxu0 0.0
    %85 = vmatpush.msra.mxu0 0.0
    %86 = vmatpush.msra.mxu0 0.0
    %87 = vmatpush.msra.mxu0 0.0
    %88 = vmatpush.msra.mxu0 0.0
    %89 = vmatpush.msra.mxu0 0.0
    %90 = vmatpush.msra.mxu0 0.0
    %91 = vmatpush.msra.mxu0 0.0
    %92 = vmatpush.msra.mxu0 %v68
    %93 = vmatpush.msra.mxu0 %v67
    %94 = vmatpush.msra.mxu0 %v66
    %95 = vmatpush.msra.mxu0 %v65
    %96 = vmatmul.f32.gmra.mxu0 %v75
    %v97 = vpop.f32.mrf.mxu0
    %v98 = vadd.f32 0.0, %v97
    %99 = vmatmul.f32.gmra.mxu0 %v78
    %v100 = vpop.f32.mrf.mxu0
    %v101 = vadd.f32 0.0, %v100
    %102 = vdwg.mxu0
    %v103 = vperm.slane %v64, 0
    %v104 = vadd.f32 %v98, %v103
    %v105 = vadd.f32 %v101, %v103
    %v106 = vmul.f32 %v104, 0.35355338
    %v107 = vmul.f32 %v105, 0.35355338
    %v108 = vperm.slane %v64, 1
    %110 = vrot.lane.b32.xlu0 %v108, 32
    %v111 = vpop.permute.xlu0 %110
    %v113 = vadd.f32 %v98, %v111
    %v114 = vadd.f32 %v101, %v111
    %v115 = vperm.slane %v64, 2
    %117 = vrot.lane.b32.xlu0 %v115, 64
    %v118 = vpop.permute.xlu0 %117
    %v120 = vadd.f32 %v98, %v118
    %v121 = vadd.f32 %v101, %v118
    %v122 = vmax.f32 %v120, 0.0
    %v123 = vmax.f32 %v121, 0.0
    %v124 = vlaneseq
    %v125 = vshrl.u32 %v124, 7
    %v126 = vadd.s32 %v125, 8
    %v127 = vlaneseq
    %v128 = vand.u32 %v127, 127
    %vm129 = vcmp.ge.s32.totalorder %v125, 8
    %vm130 = vcmp.ge.s32.totalorder %v126, 8
    %v131 = vsel %vm129, 1, 0
    %v132 = vsel %vm130, 1, 0
    %vm133 = vcmp.ge.s32.totalorder %v128, 8
    %v134 = vsel %vm133, 1, 0
    %vm135 = vcmp.eq.s32.totalorder %v131, %v134
    %vm136 = vcmp.eq.s32.totalorder %v132, %v134
    %v137 = vsel %vm135, 0.0, -1e+30
    %v138 = vsel %vm136, 0.0, -1e+30
    %vm139 = vcmp.ge.s32.totalorder %v128, 0
    %vm140 = vcmp.lt.s32.totalorder %v128, 8
    %vm141 = vmand %vm139, %vm140
    %v142 = vsel %vm141, %v106, 0.0
    %v143 = vsel %vm141, %v107, 0.0
    %146 = vrot.lane.b32.xlu0 %v113, 96
    %v147 = vpop.permute.xlu0 %146
    %148 = vrot.lane.b32.xlu0 %v114, 96
    %v149 = vpop.permute.xlu0 %148
    %v151 = vsel %vm73, %v142, 0
    %v154 = vsel %vm73, %v143, 0
    %v156 = vsel %vm73, %v147, 0
    %v158 = vsel %vm73, %v149, 0
    %160 = vmatpush.xpose.msra.mxu0 0.0
    %161 = vmatpush.xpose.msra.mxu0 0.0
    %162 = vmatpush.xpose.msra.mxu0 0.0
    %163 = vmatpush.xpose.msra.mxu0 0.0
    %164 = vmatpush.xpose.msra.mxu0 0.0
    %165 = vmatpush.xpose.msra.mxu0 0.0
    %166 = vmatpush.xpose.msra.mxu0 0.0
    %167 = vmatpush.xpose.msra.mxu0 0.0
    %168 = vmatpush.xpose.msra.mxu0 0.0
    %169 = vmatpush.xpose.msra.mxu0 0.0
    %170 = vmatpush.xpose.msra.mxu0 0.0
    %171 = vmatpush.xpose.msra.mxu0 0.0
    %172 = vmatpush.xpose.msra.mxu0 0.0
    %173 = vmatpush.xpose.msra.mxu0 0.0
    %174 = vmatpush.xpose.msra.mxu0 %v158
    %175 = vmatpush.xpose.msra.mxu0 %v156
    %176 = vmatmul.f32.gmra.mxu0 %v151
    %v177 = vpop.f32.mrf.mxu0
    %v178 = vadd.f32 %v137, %v177
    %179 = vmatmul.f32.gmra.mxu0 %v154
    %v180 = vpop.f32.mrf.mxu0
    %v181 = vadd.f32 %v138, %v180
    %182 = vdwg.mxu0
    %vm183 = vcmask 130048
    %v184 = vsel %vm183, %v178, -inf
    %185 = vmax.xlane.f32.xlu0 %v184
    %v186 = vpop.xlane.xlu0 %185
    %v187 = vsel %vm183, %v181, -inf
    %188 = vmax.xlane.f32.xlu0 %v187
    %v189 = vpop.xlane.xlu0 %188
    %v190 = vsub.f32 %v178, %v186
    %v191 = vsub.f32 %v181, %v189
    %v192 = vmul.f32 %v190, 1.442695
    %v193 = vpow.pop %v192
    %v194 = vmul.f32 %v191, 1.442695
    %v195 = vpow.pop %v194
    %v196 = vsel %vm183, %v193, 0.0
    %197 = vadd.xlane.f32.xlu0 %v196
    %v198 = vpop.xlane.xlu0 %197
    %v199 = vsel %vm183, %v195, 0.0
    %200 = vadd.xlane.f32.xlu0 %v199
    %v201 = vpop.xlane.xlu0 %200
    %v202 = vrcp.pop %v198
    %v203 = vmul.f32 %v198, %v202
    %v204 = vsub.f32 1.0, %v203
    %v205 = vmul.f32 %v202, %v204
    %v206 = vadd.f32 %v202, %v205
    %vm207 = vweird.f32 %v198
    %vm208 = vweird.f32 %v202
    %vm209 = vmor %vm207, %vm208
    %v210 = vsel %vm209, %v202, %v206
    %v211 = vand.u32 2147483647, %v198
    %vm212 = vcmp.eq.f32.partialorder %v211, 8.507059e+37
    %v213 = vand.u32 %v198, 2147483648
    %v214 = vor.u32 1.1754944e-38, %v213
    %v215 = vsel %vm212, %v214, %v210
    %v216 = vmul.f32 %v193, %v215
    %v217 = vrcp.pop %v201
    %v218 = vmul.f32 %v201, %v217
    %v219 = vsub.f32 1.0, %v218
    %v220 = vmul.f32 %v217, %v219
    %v221 = vadd.f32 %v217, %v220
    %vm222 = vweird.f32 %v201
    %vm223 = vweird.f32 %v217
    %vm224 = vmor %vm222, %vm223
    %v225 = vsel %vm224, %v217, %v221
    %v226 = vand.u32 2147483647, %v201
    %vm227 = vcmp.eq.f32.partialorder %v226, 8.507059e+37
    %v228 = vand.u32 %v201, 2147483648
    %v229 = vor.u32 1.1754944e-38, %v228
    %v230 = vsel %vm227, %v229, %v225
    %v231 = vmul.f32 %v195, %v230
    %234 = vrot.lane.b32.xlu0 %v122, 64
    %v235 = vpop.permute.xlu0 %234
    %236 = vrot.lane.b32.xlu0 %v123, 64
    %v237 = vpop.permute.xlu0 %236
    %v240 = vsel %vm141, %v235, 0.0
    %v241 = vsel %vm141, %v237, 0.0
    %vm242 = vcmp.lt.s32.totalorder %v128, 16
    %vm243 = vmand %vm133, %vm242
    %v244 = vsel %vm243, %v106, 0.0
    %v245 = vsel %vm243, %v107, 0.0
    %v247 = vsel %vm73, %v244, 0
    %v250 = vsel %vm73, %v245, 0
    %252 = vmatpush.xpose.msra.mxu0 0.0
    %253 = vmatpush.xpose.msra.mxu0 0.0
    %254 = vmatpush.xpose.msra.mxu0 0.0
    %255 = vmatpush.xpose.msra.mxu0 0.0
    %256 = vmatpush.xpose.msra.mxu0 0.0
    %257 = vmatpush.xpose.msra.mxu0 0.0
    %258 = vmatpush.xpose.msra.mxu0 0.0
    %259 = vmatpush.xpose.msra.mxu0 0.0
    %260 = vmatpush.xpose.msra.mxu0 0.0
    %261 = vmatpush.xpose.msra.mxu0 0.0
    %262 = vmatpush.xpose.msra.mxu0 0.0
    %263 = vmatpush.xpose.msra.mxu0 0.0
    %264 = vmatpush.xpose.msra.mxu0 0.0
    %265 = vmatpush.xpose.msra.mxu0 0.0
    %266 = vmatpush.xpose.msra.mxu0 %v158
    %267 = vmatpush.xpose.msra.mxu0 %v156
    %268 = vmatmul.f32.gmra.mxu0 %v247
    %v269 = vpop.f32.mrf.mxu0
    %v270 = vadd.f32 %v137, %v269
    %271 = vmatmul.f32.gmra.mxu0 %v250
    %v272 = vpop.f32.mrf.mxu0
    %v273 = vadd.f32 %v138, %v272
    %274 = vdwg.mxu0
    %v275 = vsel %vm183, %v270, -inf
    %276 = vmax.xlane.f32.xlu0 %v275
    %v277 = vpop.xlane.xlu0 %276
    %v278 = vsel %vm183, %v273, -inf
    %279 = vmax.xlane.f32.xlu0 %v278
    %v280 = vpop.xlane.xlu0 %279
    %v281 = vsub.f32 %v270, %v277
    %v282 = vsub.f32 %v273, %v280
    %v283 = vmul.f32 %v281, 1.442695
    %v284 = vpow.pop %v283
    %v285 = vmul.f32 %v282, 1.442695
    %v286 = vpow.pop %v285
    %v287 = vsel %vm183, %v284, 0.0
    %288 = vadd.xlane.f32.xlu0 %v287
    %v289 = vpop.xlane.xlu0 %288
    %v290 = vsel %vm183, %v286, 0.0
    %291 = vadd.xlane.f32.xlu0 %v290
    %v292 = vpop.xlane.xlu0 %291
    %v293 = vrcp.pop %v289
    %v294 = vmul.f32 %v289, %v293
    %v295 = vsub.f32 1.0, %v294
    %v296 = vmul.f32 %v293, %v295
    %v297 = vadd.f32 %v293, %v296
    %vm298 = vweird.f32 %v289
    %vm299 = vweird.f32 %v293
    %vm300 = vmor %vm298, %vm299
    %v301 = vsel %vm300, %v293, %v297
    %v302 = vand.u32 2147483647, %v289
    %vm303 = vcmp.eq.f32.partialorder %v302, 8.507059e+37
    %v304 = vand.u32 %v289, 2147483648
    %v305 = vor.u32 1.1754944e-38, %v304
    %v306 = vsel %vm303, %v305, %v301
    %v307 = vmul.f32 %v284, %v306
    %v308 = vrcp.pop %v292
    %v309 = vmul.f32 %v292, %v308
    %v310 = vsub.f32 1.0, %v309
    %v311 = vmul.f32 %v308, %v310
    %v312 = vadd.f32 %v308, %v311
    %vm313 = vweird.f32 %v292
    %vm314 = vweird.f32 %v308
    %vm315 = vmor %vm313, %vm314
    %v316 = vsel %vm315, %v308, %v312
    %v317 = vand.u32 2147483647, %v292
    %vm318 = vcmp.eq.f32.partialorder %v317, 8.507059e+37
    %v319 = vand.u32 %v292, 2147483648
    %v320 = vor.u32 1.1754944e-38, %v319
    %v321 = vsel %vm318, %v320, %v316
    %v322 = vmul.f32 %v286, %v321
    %v323 = vsel %vm243, %v235, 0.0
    %v324 = vsel %vm243, %v237, 0.0
    %v326 = vsel %vm183, %v307, 0
    %v329 = vsel %vm183, %v322, 0
    %331 = vmatpush.msra.mxu0 0.0
    %332 = vmatpush.msra.mxu0 0.0
    %333 = vmatpush.msra.mxu0 0.0
    %334 = vmatpush.msra.mxu0 0.0
    %335 = vmatpush.msra.mxu0 0.0
    %336 = vmatpush.msra.mxu0 0.0
    %337 = vmatpush.msra.mxu0 0.0
    %338 = vmatpush.msra.mxu0 0.0
    %339 = vmatpush.msra.mxu0 0.0
    %340 = vmatpush.msra.mxu0 0.0
    %341 = vmatpush.msra.mxu0 0.0
    %342 = vmatpush.msra.mxu0 0.0
    %343 = vmatpush.msra.mxu0 0.0
    %344 = vmatpush.msra.mxu0 0.0
    %345 = vmatpush.msra.mxu0 %v324
    %346 = vmatpush.msra.mxu0 %v323
    %347 = vmatmul.f32.gmra.mxu0 %v326
    %v348 = vpop.f32.mrf.mxu0
    %v349 = vadd.f32 0.0, %v348
    %350 = vmatmul.f32.gmra.mxu0 %v329
    %v351 = vpop.f32.mrf.mxu0
    %v352 = vadd.f32 0.0, %v351
    %353 = vdwg.mxu0
    %v355 = vsel %vm183, %v216, 0
    %v358 = vsel %vm183, %v231, 0
    %360 = vmatpush.msra.mxu0 0.0
    %361 = vmatpush.msra.mxu0 0.0
    %362 = vmatpush.msra.mxu0 0.0
    %363 = vmatpush.msra.mxu0 0.0
    %364 = vmatpush.msra.mxu0 0.0
    %365 = vmatpush.msra.mxu0 0.0
    %366 = vmatpush.msra.mxu0 0.0
    %367 = vmatpush.msra.mxu0 0.0
    %368 = vmatpush.msra.mxu0 0.0
    %369 = vmatpush.msra.mxu0 0.0
    %370 = vmatpush.msra.mxu0 0.0
    %371 = vmatpush.msra.mxu0 0.0
    %372 = vmatpush.msra.mxu0 0.0
    %373 = vmatpush.msra.mxu0 0.0
    %374 = vmatpush.msra.mxu0 %v241
    %375 = vmatpush.msra.mxu0 %v240
    %376 = vmatmul.f32.gmra.mxu0 %v355
    %v377 = vpop.f32.mrf.mxu0
    %v378 = vadd.f32 %v349, %v377
    %379 = vmatmul.f32.gmra.mxu0 %v358
    %v380 = vpop.f32.mrf.mxu0
    %v381 = vadd.f32 %v352, %v380
    %382 = vdwg.mxu0
    %vm383 = vcmp.ge.s32.totalorder %v128, 16
    %vm384 = vcmp.lt.s32.totalorder %v128, 24
    %vm385 = vmand %vm383, %vm384
    %v386 = vsel %vm385, %v106, 0.0
    %v387 = vsel %vm385, %v107, 0.0
    %v389 = vsel %vm73, %v386, 0
    %v392 = vsel %vm73, %v387, 0
    %394 = vmatpush.xpose.msra.mxu0 0.0
    %395 = vmatpush.xpose.msra.mxu0 0.0
    %396 = vmatpush.xpose.msra.mxu0 0.0
    %397 = vmatpush.xpose.msra.mxu0 0.0
    %398 = vmatpush.xpose.msra.mxu0 0.0
    %399 = vmatpush.xpose.msra.mxu0 0.0
    %400 = vmatpush.xpose.msra.mxu0 0.0
    %401 = vmatpush.xpose.msra.mxu0 0.0
    %402 = vmatpush.xpose.msra.mxu0 0.0
    %403 = vmatpush.xpose.msra.mxu0 0.0
    %404 = vmatpush.xpose.msra.mxu0 0.0
    %405 = vmatpush.xpose.msra.mxu0 0.0
    %406 = vmatpush.xpose.msra.mxu0 0.0
    %407 = vmatpush.xpose.msra.mxu0 0.0
    %408 = vmatpush.xpose.msra.mxu0 %v158
    %409 = vmatpush.xpose.msra.mxu0 %v156
    %410 = vmatmul.f32.gmra.mxu0 %v389
    %v411 = vpop.f32.mrf.mxu0
    %v412 = vadd.f32 %v137, %v411
    %413 = vmatmul.f32.gmra.mxu0 %v392
    %v414 = vpop.f32.mrf.mxu0
    %v415 = vadd.f32 %v138, %v414
    %416 = vdwg.mxu0
    %v417 = vsel %vm183, %v412, -inf
    %418 = vmax.xlane.f32.xlu0 %v417
    %v419 = vpop.xlane.xlu0 %418
    %v420 = vsel %vm183, %v415, -inf
    %421 = vmax.xlane.f32.xlu0 %v420
    %v422 = vpop.xlane.xlu0 %421
    %v423 = vsub.f32 %v412, %v419
    %v424 = vsub.f32 %v415, %v422
    %v425 = vmul.f32 %v423, 1.442695
    %v426 = vpow.pop %v425
    %v427 = vmul.f32 %v424, 1.442695
    %v428 = vpow.pop %v427
    %v429 = vsel %vm183, %v426, 0.0
    %430 = vadd.xlane.f32.xlu0 %v429
    %v431 = vpop.xlane.xlu0 %430
    %v432 = vsel %vm183, %v428, 0.0
    %433 = vadd.xlane.f32.xlu0 %v432
    %v434 = vpop.xlane.xlu0 %433
    %v435 = vrcp.pop %v431
    %v436 = vmul.f32 %v431, %v435
    %v437 = vsub.f32 1.0, %v436
    %v438 = vmul.f32 %v435, %v437
    %v439 = vadd.f32 %v435, %v438
    %vm440 = vweird.f32 %v431
    %vm441 = vweird.f32 %v435
    %vm442 = vmor %vm440, %vm441
    %v443 = vsel %vm442, %v435, %v439
    %v444 = vand.u32 2147483647, %v431
    %vm445 = vcmp.eq.f32.partialorder %v444, 8.507059e+37
    %v446 = vand.u32 %v431, 2147483648
    %v447 = vor.u32 1.1754944e-38, %v446
    %v448 = vsel %vm445, %v447, %v443
    %v449 = vmul.f32 %v426, %v448
    %v450 = vrcp.pop %v434
    %v451 = vmul.f32 %v434, %v450
    %v452 = vsub.f32 1.0, %v451
    %v453 = vmul.f32 %v450, %v452
    %v454 = vadd.f32 %v450, %v453
    %vm455 = vweird.f32 %v434
    %vm456 = vweird.f32 %v450
    %vm457 = vmor %vm455, %vm456
    %v458 = vsel %vm457, %v450, %v454
    %v459 = vand.u32 2147483647, %v434
    %vm460 = vcmp.eq.f32.partialorder %v459, 8.507059e+37
    %v461 = vand.u32 %v434, 2147483648
    %v462 = vor.u32 1.1754944e-38, %v461
    %v463 = vsel %vm460, %v462, %v458
    %v464 = vmul.f32 %v428, %v463
    %v465 = vsel %vm385, %v235, 0.0
    %v466 = vsel %vm385, %v237, 0.0
    %v468 = vsel %vm183, %v449, 0
    %v471 = vsel %vm183, %v464, 0
    %473 = vmatpush.msra.mxu0 0.0
    %474 = vmatpush.msra.mxu0 0.0
    %475 = vmatpush.msra.mxu0 0.0
    %476 = vmatpush.msra.mxu0 0.0
    %477 = vmatpush.msra.mxu0 0.0
    %478 = vmatpush.msra.mxu0 0.0
    %479 = vmatpush.msra.mxu0 0.0
    %480 = vmatpush.msra.mxu0 0.0
    %481 = vmatpush.msra.mxu0 0.0
    %482 = vmatpush.msra.mxu0 0.0
    %483 = vmatpush.msra.mxu0 0.0
    %484 = vmatpush.msra.mxu0 0.0
    %485 = vmatpush.msra.mxu0 0.0
    %486 = vmatpush.msra.mxu0 0.0
    %487 = vmatpush.msra.mxu0 %v466
    %488 = vmatpush.msra.mxu0 %v465
    %489 = vmatmul.f32.gmra.mxu0 %v468
    %v490 = vpop.f32.mrf.mxu0
    %v491 = vadd.f32 0.0, %v490
    %492 = vmatmul.f32.gmra.mxu0 %v471
    %v493 = vpop.f32.mrf.mxu0
    %v494 = vadd.f32 0.0, %v493
    %495 = vdwg.mxu0
    %v496 = vadd.f32 %v378, %v491
    %v497 = vadd.f32 %v381, %v494
    %vm498 = vcmp.ge.s32.totalorder %v128, 24
    %vm499 = vcmp.lt.s32.totalorder %v128, 32
    %vm500 = vmand %vm498, %vm499
    %v501 = vsel %vm500, %v106, 0.0
    %v502 = vsel %vm500, %v107, 0.0
    %v504 = vsel %vm73, %v501, 0
    %v507 = vsel %vm73, %v502, 0
    %509 = vmatpush.xpose.msra.mxu0 0.0
    %510 = vmatpush.xpose.msra.mxu0 0.0
    %511 = vmatpush.xpose.msra.mxu0 0.0
    %512 = vmatpush.xpose.msra.mxu0 0.0
    %513 = vmatpush.xpose.msra.mxu0 0.0
    %514 = vmatpush.xpose.msra.mxu0 0.0
    %515 = vmatpush.xpose.msra.mxu0 0.0
    %516 = vmatpush.xpose.msra.mxu0 0.0
    %517 = vmatpush.xpose.msra.mxu0 0.0
    %518 = vmatpush.xpose.msra.mxu0 0.0
    %519 = vmatpush.xpose.msra.mxu0 0.0
    %520 = vmatpush.xpose.msra.mxu0 0.0
    %521 = vmatpush.xpose.msra.mxu0 0.0
    %522 = vmatpush.xpose.msra.mxu0 0.0
    %523 = vmatpush.xpose.msra.mxu0 %v158
    %524 = vmatpush.xpose.msra.mxu0 %v156
    %525 = vmatmul.f32.gmra.mxu0 %v504
    %v526 = vpop.f32.mrf.mxu0
    %v527 = vadd.f32 %v137, %v526
    %528 = vmatmul.f32.gmra.mxu0 %v507
    %v529 = vpop.f32.mrf.mxu0
    %v530 = vadd.f32 %v138, %v529
    %531 = vdwg.mxu0
    %v532 = vsel %vm183, %v527, -inf
    %533 = vmax.xlane.f32.xlu0 %v532
    %v534 = vpop.xlane.xlu0 %533
    %v535 = vsel %vm183, %v530, -inf
    %536 = vmax.xlane.f32.xlu0 %v535
    %v537 = vpop.xlane.xlu0 %536
    %v538 = vsub.f32 %v527, %v534
    %v539 = vsub.f32 %v530, %v537
    %v540 = vmul.f32 %v538, 1.442695
    %v541 = vpow.pop %v540
    %v542 = vmul.f32 %v539, 1.442695
    %v543 = vpow.pop %v542
    %v544 = vsel %vm183, %v541, 0.0
    %545 = vadd.xlane.f32.xlu0 %v544
    %v546 = vpop.xlane.xlu0 %545
    %v547 = vsel %vm183, %v543, 0.0
    %548 = vadd.xlane.f32.xlu0 %v547
    %v549 = vpop.xlane.xlu0 %548
    %v550 = vrcp.pop %v546
    %v551 = vmul.f32 %v546, %v550
    %v552 = vsub.f32 1.0, %v551
    %v553 = vmul.f32 %v550, %v552
    %v554 = vadd.f32 %v550, %v553
    %vm555 = vweird.f32 %v546
    %vm556 = vweird.f32 %v550
    %vm557 = vmor %vm555, %vm556
    %v558 = vsel %vm557, %v550, %v554
    %v559 = vand.u32 2147483647, %v546
    %vm560 = vcmp.eq.f32.partialorder %v559, 8.507059e+37
    %v561 = vand.u32 %v546, 2147483648
    %v562 = vor.u32 1.1754944e-38, %v561
    %v563 = vsel %vm560, %v562, %v558
    %v564 = vmul.f32 %v541, %v563
    %v565 = vrcp.pop %v549
    %v566 = vmul.f32 %v549, %v565
    %v567 = vsub.f32 1.0, %v566
    %v568 = vmul.f32 %v565, %v567
    %v569 = vadd.f32 %v565, %v568
    %vm570 = vweird.f32 %v549
    %vm571 = vweird.f32 %v565
    %vm572 = vmor %vm570, %vm571
    %v573 = vsel %vm572, %v565, %v569
    %v574 = vand.u32 2147483647, %v549
    %vm575 = vcmp.eq.f32.partialorder %v574, 8.507059e+37
    %v576 = vand.u32 %v549, 2147483648
    %v577 = vor.u32 1.1754944e-38, %v576
    %v578 = vsel %vm575, %v577, %v573
    %v579 = vmul.f32 %v543, %v578
    %v580 = vsel %vm500, %v235, 0.0
    %v581 = vsel %vm500, %v237, 0.0
    %v583 = vsel %vm183, %v564, 0
    %v586 = vsel %vm183, %v579, 0
    %588 = vmatpush.msra.mxu0 0.0
    %589 = vmatpush.msra.mxu0 0.0
    %590 = vmatpush.msra.mxu0 0.0
    %591 = vmatpush.msra.mxu0 0.0
    %592 = vmatpush.msra.mxu0 0.0
    %593 = vmatpush.msra.mxu0 0.0
    %594 = vmatpush.msra.mxu0 0.0
    %595 = vmatpush.msra.mxu0 0.0
    %596 = vmatpush.msra.mxu0 0.0
    %597 = vmatpush.msra.mxu0 0.0
    %598 = vmatpush.msra.mxu0 0.0
    %599 = vmatpush.msra.mxu0 0.0
    %600 = vmatpush.msra.mxu0 0.0
    %601 = vmatpush.msra.mxu0 0.0
    %602 = vmatpush.msra.mxu0 %v581
    %603 = vmatpush.msra.mxu0 %v580
    %604 = vmatmul.f32.gmra.mxu0 %v583
    %v605 = vpop.f32.mrf.mxu0
    %v606 = vadd.f32 0.0, %v605
    %607 = vmatmul.f32.gmra.mxu0 %v586
    %v608 = vpop.f32.mrf.mxu0
    %v609 = vadd.f32 0.0, %v608
    %610 = vdwg.mxu0
    %v611 = vadd.f32 %v496, %v606
    %v612 = vadd.f32 %v497, %v609
    %v613 = vperm.slane %v64, 3
    %618 = vrot.lane.b32.xlu0 %v65, 32
    %v619 = vpop.permute.xlu0 %618
    %620 = vrot.lane.b32.xlu0 %v66, 32
    %v621 = vpop.permute.xlu0 %620
    %622 = vrot.lane.b32.xlu0 %v67, 32
    %v623 = vpop.permute.xlu0 %622
    %624 = vrot.lane.b32.xlu0 %v68, 32
    %v625 = vpop.permute.xlu0 %624
    %v631 = vsel %vm73, %v611, 0
    %v634 = vsel %vm73, %v612, 0
    %636 = vmatpush.msra.mxu0 0.0
    %637 = vmatpush.msra.mxu0 0.0
    %638 = vmatpush.msra.mxu0 0.0
    %639 = vmatpush.msra.mxu0 0.0
    %640 = vmatpush.msra.mxu0 0.0
    %641 = vmatpush.msra.mxu0 0.0
    %642 = vmatpush.msra.mxu0 0.0
    %643 = vmatpush.msra.mxu0 0.0
    %644 = vmatpush.msra.mxu0 0.0
    %645 = vmatpush.msra.mxu0 0.0
    %646 = vmatpush.msra.mxu0 0.0
    %647 = vmatpush.msra.mxu0 0.0
    %648 = vmatpush.msra.mxu0 %v625
    %649 = vmatpush.msra.mxu0 %v623
    %650 = vmatpush.msra.mxu0 %v621
    %651 = vmatpush.msra.mxu0 %v619
    %652 = vmatmul.f32.gmra.mxu0 %v631
    %v653 = vpop.f32.mrf.mxu0
    %v654 = vadd.f32 %v613, %v653
    %655 = vmatmul.f32.gmra.mxu0 %v634
    %v656 = vpop.f32.mrf.mxu0
    %v657 = vadd.f32 %v613, %v656
    %658 = vdwg.mxu0
    %v659 = vmax.f32 %v654, 0.0
    %v660 = vmax.f32 %v657, 0.0
    %v661 = vsel %vm73, %v659, 0.0
    %662 = vadd.xlane.f32.xlu0 %v661
    %v663 = vpop.xlane.xlu0 %662
    %v664 = vsel %vm73, %v660, 0.0
    %665 = vadd.xlane.f32.xlu0 %v664
    %v666 = vpop.xlane.xlu0 %665
    %v667 = vrcp.pop 32.0
    %v668 = vmul.f32 32.0, %v667
    %v669 = vsub.f32 1.0, %v668
    %v670 = vmul.f32 %v667, %v669
    %v671 = vadd.f32 %v667, %v670
    %vm672 = vweird.f32 %v667
    %v673 = vsel %vm672, %v667, %v671
    %v674 = vmul.f32 %v663, %v673
    %v675 = vmul.f32 %v666, %v673
    %v676 = vsub.f32 %v659, %v674
    %v677 = vsub.f32 %v660, %v675
    %v678 = vmul.f32 %v676, %v676
    %v679 = vmul.f32 %v677, %v677
    %v680 = vsel %vm73, %v678, 0.0
    %681 = vadd.xlane.f32.xlu0 %v680
    %v682 = vpop.xlane.xlu0 %681
    %v683 = vsel %vm73, %v679, 0.0
    %684 = vadd.xlane.f32.xlu0 %v683
    %v685 = vpop.xlane.xlu0 %684
    %v686 = vmul.f32 %v682, %v673
    %v687 = vmul.f32 %v685, %v673
    %v688 = vadd.f32 %v686, 1e-05
    %v689 = vadd.f32 %v687, 1e-05
    %v690 = vrsqrt.pop %v688
    %v691 = vmul.f32 %v690, %v688
    %v692 = vmul.f32 %v691, %v690
    %v693 = vmul.f32 0.5, %v692
    %v694 = vsub.f32 1.5, %v693
    %v695 = vmul.f32 %v690, %v694
    %v696 = vmul.f32 %v688, %v695
    %vm697 = vcmp.eq.f32.partialorder %v688, inf
    %v698 = vsel %vm697, %v688, %v696
    %vm699 = vcmp.eq.f32.partialorder %v688, 0.0
    %v700 = vand.u32 %v688, 2147483648
    %v701 = vsel %vm699, %v700, %v698
    %v702 = vrsqrt.pop %v689
    %v703 = vmul.f32 %v702, %v689
    %v704 = vmul.f32 %v703, %v702
    %v705 = vmul.f32 0.5, %v704
    %v706 = vsub.f32 1.5, %v705
    %v707 = vmul.f32 %v702, %v706
    %v708 = vmul.f32 %v689, %v707
    %vm709 = vcmp.eq.f32.partialorder %v689, inf
    %v710 = vsel %vm709, %v689, %v708
    %vm711 = vcmp.eq.f32.partialorder %v689, 0.0
    %v712 = vand.u32 %v689, 2147483648
    %v713 = vsel %vm711, %v712, %v710
    %v714 = vrcp.pop %v701
    %v715 = vmul.f32 %v701, %v714
    %v716 = vsub.f32 1.0, %v715
    %v717 = vmul.f32 %v714, %v716
    %v718 = vadd.f32 %v714, %v717
    %vm719 = vweird.f32 %v701
    %vm720 = vweird.f32 %v714
    %vm721 = vmor %vm719, %vm720
    %v722 = vsel %vm721, %v714, %v718
    %v723 = vand.u32 2147483647, %v701
    %vm724 = vcmp.eq.f32.partialorder %v723, 8.507059e+37
    %v725 = vand.u32 %v701, 2147483648
    %v726 = vor.u32 1.1754944e-38, %v725
    %v727 = vsel %vm724, %v726, %v722
    %v728 = vmul.f32 %v676, %v727
    %v729 = vrcp.pop %v713
    %v730 = vmul.f32 %v713, %v729
    %v731 = vsub.f32 1.0, %v730
    %v732 = vmul.f32 %v729, %v731
    %v733 = vadd.f32 %v729, %v732
    %vm734 = vweird.f32 %v713
    %vm735 = vweird.f32 %v729
    %vm736 = vmor %vm734, %vm735
    %v737 = vsel %vm736, %v729, %v733
    %v738 = vand.u32 2147483647, %v713
    %vm739 = vcmp.eq.f32.partialorder %v738, 8.507059e+37
    %v740 = vand.u32 %v713, 2147483648
    %v741 = vor.u32 1.1754944e-38, %v740
    %v742 = vsel %vm739, %v741, %v737
    %v743 = vmul.f32 %v677, %v742
    %v744 = vperm.slane %v64, 4
    %v745 = vmul.f32 %v728, %v744
    %v746 = vmul.f32 %v743, %v744
    %v747 = vperm.slane %v64, 5
    %v748 = vadd.f32 %v745, %v747
    %v749 = vadd.f32 %v746, %v747
    %v750 = vadd.f32 %v71, %v748
    %v751 = vadd.f32 %v72, %v749
    %v752 = vsel %vm73, %v750, 0.0
    %753 = vadd.xlane.f32.xlu0 %v752
    %v754 = vpop.xlane.xlu0 %753
    %v755 = vsel %vm73, %v751, 0.0
    %756 = vadd.xlane.f32.xlu0 %v755
    %v757 = vpop.xlane.xlu0 %756
    %v758 = vmul.f32 %v754, %v673
    %v759 = vmul.f32 %v757, %v673
    %v760 = vsub.f32 %v750, %v758
    %v761 = vsub.f32 %v751, %v759
    %v762 = vmul.f32 %v760, %v760
    %v763 = vmul.f32 %v761, %v761
    %v764 = vsel %vm73, %v762, 0.0
    %765 = vadd.xlane.f32.xlu0 %v764
    %v766 = vpop.xlane.xlu0 %765
    %v767 = vsel %vm73, %v763, 0.0
    %768 = vadd.xlane.f32.xlu0 %v767
    %v769 = vpop.xlane.xlu0 %768
    %v770 = vmul.f32 %v766, %v673
    %v771 = vmul.f32 %v769, %v673
    %v772 = vadd.f32 %v770, 1e-05
    %v773 = vadd.f32 %v771, 1e-05
    %v774 = vrsqrt.pop %v772
    %v775 = vmul.f32 %v774, %v772
    %v776 = vmul.f32 %v775, %v774
    %v777 = vmul.f32 0.5, %v776
    %v778 = vsub.f32 1.5, %v777
    %v779 = vmul.f32 %v774, %v778
    %v780 = vmul.f32 %v772, %v779
    %vm781 = vcmp.eq.f32.partialorder %v772, inf
    %v782 = vsel %vm781, %v772, %v780
    %vm783 = vcmp.eq.f32.partialorder %v772, 0.0
    %v784 = vand.u32 %v772, 2147483648
    %v785 = vsel %vm783, %v784, %v782
    %v786 = vrsqrt.pop %v773
    %v787 = vmul.f32 %v786, %v773
    %v788 = vmul.f32 %v787, %v786
    %v789 = vmul.f32 0.5, %v788
    %v790 = vsub.f32 1.5, %v789
    %v791 = vmul.f32 %v786, %v790
    %v792 = vmul.f32 %v773, %v791
    %vm793 = vcmp.eq.f32.partialorder %v773, inf
    %v794 = vsel %vm793, %v773, %v792
    %vm795 = vcmp.eq.f32.partialorder %v773, 0.0
    %v796 = vand.u32 %v773, 2147483648
    %v797 = vsel %vm795, %v796, %v794
    %v798 = vrcp.pop %v785
    %v799 = vmul.f32 %v785, %v798
    %v800 = vsub.f32 1.0, %v799
    %v801 = vmul.f32 %v798, %v800
    %v802 = vadd.f32 %v798, %v801
    %vm803 = vweird.f32 %v785
    %vm804 = vweird.f32 %v798
    %vm805 = vmor %vm803, %vm804
    %v806 = vsel %vm805, %v798, %v802
    %v807 = vand.u32 2147483647, %v785
    %vm808 = vcmp.eq.f32.partialorder %v807, 8.507059e+37
    %v809 = vand.u32 %v785, 2147483648
    %v810 = vor.u32 1.1754944e-38, %v809
    %v811 = vsel %vm808, %v810, %v806
    %v812 = vmul.f32 %v760, %v811
    %v813 = vrcp.pop %v797
    %v814 = vmul.f32 %v797, %v813
    %v815 = vsub.f32 1.0, %v814
    %v816 = vmul.f32 %v813, %v815
    %v817 = vadd.f32 %v813, %v816
    %vm818 = vweird.f32 %v797
    %vm819 = vweird.f32 %v813
    %vm820 = vmor %vm818, %vm819
    %v821 = vsel %vm820, %v813, %v817
    %v822 = vand.u32 2147483647, %v797
    %vm823 = vcmp.eq.f32.partialorder %v822, 8.507059e+37
    %v824 = vand.u32 %v797, 2147483648
    %v825 = vor.u32 1.1754944e-38, %v824
    %v826 = vsel %vm823, %v825, %v821
    %v827 = vmul.f32 %v761, %v826
    %v828 = vperm.slane %v64, 6
    %v829 = vmul.f32 %v812, %v828
    %v830 = vmul.f32 %v827, %v828
    %v831 = vperm.slane %v64, 7
    %v832 = vadd.f32 %v829, %v831
    %v833 = vadd.f32 %v830, %v831
    %834 = vst.msk [vmem:[#allocation8] sm:$0xff] %vm73, %v832
    %835 = vst.msk [vmem:[#allocation8 + $0x8] sm:$0xff] %vm73, %v833
    // Predicated region
    $region26: #{tpu_custom_call.1} parent=1 // pred_check
      _
    $region27: #{tpu_custom_call.1} parent=1 // pred_check_branch
      %837 = sbr.rel (0) target = $region29
    $region28: #{tpu_custom_call.1} parent=1 // pred_region
      %839 = vsyncadd [#allocation4], 0
      %s840 = sshll.u32 [#allocation8], 4
      %s841 = int_to_ptr.vmem [resolvable:$true] %s840
      %s842 = sshll.u32 %s3, 4
      %s843 = int_to_ptr.hbm [resolvable:$true] %s842
      %848 = dma.vmem_to_hbm [thread:$0]  %s841, 256, %s843, [#allocation4], 128, 128, 8
    $region29: #{tpu_custom_call.1} parent=1 // pred_fallthru
      _
    // Predicated region
    $region30: #{tpu_custom_call.1} parent=1 // pred_check
      _
    $region31: #{tpu_custom_call.1} parent=1 // pred_check_branch
      %850 = sbr.rel (0) target = $region33
    $region32: #{tpu_custom_call.1} parent=1 // pred_region
      %852 = dma.done [#allocation4], 256
    $region33: #{tpu_custom_call.1} parent=1 // pred_fallthru
      _
    %853 = vsyncpa [#allocation3], 1
    %854 = vsyncpa [#allocation6], 1
    %855 = vsyncpa [#allocation4], 1

</llo_original>
